<compile_context>
chip_gen: v7x
topology: tpu7x:2x2x1
jax: 0.10.0
libtpu: 0.0.40
codegen_flags: <defaults>
</compile_context>

<pallas_src>
import jax
import jax.numpy as jnp
from jax.experimental import pallas as pl
from jax.experimental.pallas import tpu as pltpu

_EDGE_WEIGHT = 4.0
_DICE_EPS = 1e-7
_LOG_CLAMP = -100.0
_LANES = 128

# Row-tile cap sized for v7x (64 MiB physical VMEM): 2048x128 f32 = 1 MiB per buffer,
# (3 inputs + 1 output) double-buffered ~ 8 MiB.  v5e/v6e (128 MiB) could go larger with a
# raised vmem_limit_bytes, but 2048 already amortizes the ~0.35us/step grid overhead.
_MAX_TILE_ROWS = 2048


def _pick_tile_rows(rows, max_tile):
    """Largest tile that divides `rows`, is a multiple of 8 (or the whole array)."""
    if rows <= max_tile:
        return rows
    assert rows % 8 == 0, "rows (= numel/128) must be a multiple of 8 for tiled streaming"
    t = max_tile - (max_tile % 8)
    while t >= 8:
        if rows % t == 0:
            return t
        t -= 8
    return 8


def _make_bce_dice_kernel(tile_r, sub):
    """Weighted-BCE map + dice partial sums, accumulated across the row-tile grid."""
    groups = tile_r // sub

    def kernel(pred_ref, target_ref, edge_ref, bce_ref, acc_ref):
        i = pl.program_id(0)

        @pl.when(i == 0)
        def _init():
            acc_ref[...] = jnp.zeros_like(acc_ref)

        p = pred_ref[...]
        t = target_ref[...]
        e = edge_ref[...]

        # torch.nn.BCELoss clamps log outputs at -100
        log_p = jnp.maximum(jnp.log(p), _LOG_CLAMP)
        log_1mp = jnp.maximum(jnp.log(1.0 - p), _LOG_CLAMP)
        bce = -(t * log_p + (1.0 - t) * log_1mp)

        # edge==0 -> 1.0 ; edge==255 -> 4.0 ; other values passed through (matches in-place edit)
        w = jnp.where(e == 0.0, 1.0, jnp.where(e == 255.0, _EDGE_WEIGHT, e))
        bce = bce * w
        bce_ref[...] = bce

        # vreg-shaped partial dice sums (no cross-lane reduce per tile; better accuracy too)
        def part(x):
            return jnp.sum(x.reshape(groups, sub, _LANES), axis=0)

        acc_ref[0] += part(p * t)   # intersection
        acc_ref[1] += part(p)       # sum(pred)
        acc_ref[2] += part(t)       # sum(target)

    return kernel


def _make_ohem_kernel(tile_r, sub):
    """Streaming OHEM reduce: masked sum and count of bce >= min_value."""
    groups = tile_r // sub

    def kernel(minval_ref, bce_ref, acc_ref):
        i = pl.program_id(0)

        @pl.when(i == 0)
        def _init():
            acc_ref[...] = jnp.zeros_like(acc_ref)

        bce = bce_ref[...]
        mv = minval_ref[...]                 # (1, 128), broadcasts over rows
        mask = bce >= mv
        sel = jnp.where(mask, bce, 0.0)
        cnt = mask.astype(jnp.float32)

        def part(x):
            return jnp.sum(x.reshape(groups, sub, _LANES), axis=0)

        acc_ref[0] += part(sel)
        acc_ref[1] += part(cnt)

    return kernel


def edge_bce_dice_loss(pred, target, edge, thresh=0.75, max_tile_rows=_MAX_TILE_ROWS):
    """Functional equivalent of edgeBCE_Dice_loss.forward (no learnable parameters)."""
    pred = jnp.asarray(pred, jnp.float32)
    target = jnp.asarray(target, jnp.float32)
    edge = jnp.asarray(edge, jnp.float32)

    numel = pred.size
    assert numel % _LANES == 0, "wrapper assumes numel divisible by 128"
    rows = numel // _LANES

    tile_r = _pick_tile_rows(rows, max_tile_rows)
    sub = 8 if tile_r % 8 == 0 else tile_r
    grid = (rows // tile_r,)

    # row-major flatten == torch .contiguous().view(-1)
    p2 = pred.reshape(rows, _LANES)
    t2 = target.reshape(rows, _LANES)
    e2 = edge.reshape(rows, _LANES)

    # ---- pass 1: weighted BCE map + dice partial sums (tiled, pipelined) ----
    bce_map, dice_parts = pl.pallas_call(
        _make_bce_dice_kernel(tile_r, sub),
        grid=grid,
        in_specs=[pl.BlockSpec((tile_r, _LANES), lambda i: (i, 0))] * 3,
        out_specs=(
            pl.BlockSpec((tile_r, _LANES), lambda i: (i, 0)),
            pl.BlockSpec((3, sub, _LANES), lambda i: (0, 0, 0)),   # resident accumulator
        ),
        out_shape=(
            jax.ShapeDtypeStruct((rows, _LANES), jnp.float32),
            jax.ShapeDtypeStruct((3, sub, _LANES), jnp.float32),
        ),
        compiler_params=pltpu.CompilerParams(dimension_semantics=("arbitrary",)),
    )(p2, t2, e2)

    # ---- OHEM threshold: exact k-th order statistic via top_k (no full sort) ----
    k = min(int(thresh * numel), numel - 1)      # clamp avoids OOB at thresh == 1.0
    n_top = numel - k                            # >= 1
    top_vals, _ = jax.lax.top_k(bce_map.reshape(-1), n_top)
    min_value = top_vals[n_top - 1]              # == sorted_ascending(bce)[k]
    mv_row = jnp.full((1, _LANES), min_value, dtype=jnp.float32)

    # ---- pass 2: OHEM masked-sum / count (tiled streaming reduce) ----
    ohem_parts = pl.pallas_call(
        _make_ohem_kernel(tile_r, sub),
        grid=grid,
        in_specs=[
            pl.BlockSpec((1, _LANES), lambda i: (0, 0)),           # threshold row
            pl.BlockSpec((tile_r, _LANES), lambda i: (i, 0)),      # bce map tiles
        ],
        out_specs=pl.BlockSpec((2, sub, _LANES), lambda i: (0, 0, 0)),
        out_shape=jax.ShapeDtypeStruct((2, sub, _LANES), jnp.float32),
        compiler_params=pltpu.CompilerParams(dimension_semantics=("arbitrary",)),
    )(mv_row, bce_map)

    # ---- tiny scalar combine (few KB of data) ----
    inter = jnp.sum(dice_parts[0])
    sum_p = jnp.sum(dice_parts[1])
    sum_t = jnp.sum(dice_parts[2])
    sel_sum = jnp.sum(ohem_parts[0])
    sel_cnt = jnp.sum(ohem_parts[1])

    loss_bce = sel_sum / sel_cnt
    dice = 2.0 * inter / jnp.maximum(sum_p + sum_t, _DICE_EPS)
    loss_dice = (1.0 - dice) * jnp.where(sum_t > 0.0, 1.0, 0.0)
    return loss_bce + loss_dice


def _reference(pred, target, edge, thresh=0.75):
    """Pure-JAX reference mirroring the PyTorch forward (full sort, global sums)."""
    p = pred.astype(jnp.float32).reshape(-1)
    t = target.astype(jnp.float32).reshape(-1)
    e = edge.astype(jnp.float32).reshape(-1)
    log_p = jnp.maximum(jnp.log(p), _LOG_CLAMP)
    log_1mp = jnp.maximum(jnp.log(1.0 - p), _LOG_CLAMP)
    bce = -(t * log_p + (1.0 - t) * log_1mp)
    w = jnp.where(e == 0.0, 1.0, jnp.where(e == 255.0, _EDGE_WEIGHT, e))
    bce = bce * w
    k = min(int(thresh * bce.size), bce.size - 1)
    mv = jnp.sort(bce)[k]
    mask = bce >= mv
    loss_bce = jnp.sum(jnp.where(mask, bce, 0.0)) / jnp.sum(mask.astype(jnp.float32))
    inter = jnp.sum(p * t)
    card = jnp.sum(p) + jnp.sum(t)
    dice = 2.0 * inter / jnp.maximum(card, _DICE_EPS)
    dice_loss = (1.0 - dice) * (jnp.sum(t) > 0).astype(jnp.float32)
    return loss_bce + dice_loss


if __name__ == "__main__":
    key = jax.random.PRNGKey(0)
    k1, k2, k3 = jax.random.split(key, 3)
    N, C, H, W = 2, 1, 64, 64  # NCHW, binary change-detection map

    pred = jax.nn.sigmoid(jax.random.normal(k1, (N, C, H, W), jnp.float32))      # probabilities
    target = (jax.random.uniform(k2, (N, C, H, W)) > 0.5).astype(jnp.float32)     # {0,1}
    edge = jnp.where(jax.random.uniform(k3, (N, C, H, W)) > 0.8, 255.0, 0.0)      # {0,255}
    edge = edge.astype(jnp.float32)

    ref = _reference(pred, target, edge)

    # multi-tile path: rows=64, tile=16 -> grid of 4, exercises the cross-step accumulators
    loss_tiled = edge_bce_dice_loss(pred, target, edge, max_tile_rows=16)
    # default path: whole (small) map in one tile (production cap = 2048 rows)
    loss_full = edge_bce_dice_loss(pred, target, edge)
    jax.block_until_ready((loss_tiled, loss_full))

    assert jnp.allclose(loss_tiled, ref, rtol=1e-5, atol=1e-5), (loss_tiled, ref)
    assert jnp.allclose(loss_full, ref, rtol=1e-5, atol=1e-5), (loss_full, ref)

    print("KERNEL_OK")
</pallas_src>

<mosaic_0001>
module attributes {stable_mosaic.version = 11 : i64} {
  func.func @kernel(%arg0: i32, %arg1: memref<16x128xf32, #tpu.memory_space<vmem>>, %arg2: memref<16x128xf32, #tpu.memory_space<vmem>>, %arg3: memref<16x128xf32, #tpu.memory_space<vmem>>, %arg4: memref<16x128xf32, #tpu.memory_space<vmem>>, %arg5: memref<3x8x128xf32, #tpu.memory_space<vmem>>) attributes {dimension_semantics = [#tpu.dimension_semantics<arbitrary>], iteration_bounds = array<i64: 4>, scalar_prefetch = 0 : i64, scratch_operands = 0 : i64, tpu.core_type = #tpu.core_type<tc>, window_params = [{transform_indices = @transform_0, window_bounds = array<i64: 16, 128>}, {transform_indices = @transform_1, window_bounds = array<i64: 16, 128>}, {transform_indices = @transform_2, window_bounds = array<i64: 16, 128>}, {transform_indices = @transform_3, window_bounds = array<i64: 16, 128>}, {pipeline_mode = #tpu.pipeline_mode<synchronous>, transform_indices = @transform_4, window_bounds = array<i64: 3, 8, 128>}]} {
    %c0_i32 = arith.constant 0 : i32
    %0 = arith.cmpi eq, %arg0, %c0_i32 : i32
    %1 = arith.extui %0 : i1 to i32
    %c0_i32_0 = arith.constant 0 : i32
    %2 = arith.cmpi ne, %1, %c0_i32_0 : i32
    scf.if %2 {
      %cst_35 = arith.constant 0.000000e+00 : f32
      %56 = vector.broadcast %cst_35 : f32 to vector<3x8x128xf32>
      %c0_36 = arith.constant 0 : index
      %c0_37 = arith.constant 0 : index
      %c0_38 = arith.constant 0 : index
      %57 = vector.load %arg5[%c0_36, %c0_37, %c0_38] : memref<3x8x128xf32, #tpu.memory_space<vmem>>, vector<3x8x128xf32>
      tpu.vector_store %arg5[%c0_36, %c0_37, %c0_38], %56 {strides = array<i32>} : memref<3x8x128xf32, #tpu.memory_space<vmem>>, vector<3x8x128xf32>,
    } else {
    }
    %c0 = arith.constant 0 : index
    %c0_1 = arith.constant 0 : index
    %3 = vector.load %arg1[%c0, %c0_1] : memref<16x128xf32, #tpu.memory_space<vmem>>, vector<16x128xf32>
    %c0_2 = arith.constant 0 : index
    %c0_3 = arith.constant 0 : index
    %4 = vector.load %arg2[%c0_2, %c0_3] : memref<16x128xf32, #tpu.memory_space<vmem>>, vector<16x128xf32>
    %c0_4 = arith.constant 0 : index
    %c0_5 = arith.constant 0 : index
    %5 = vector.load %arg3[%c0_4, %c0_5] : memref<16x128xf32, #tpu.memory_space<vmem>>, vector<16x128xf32>
    %6 = math.log %3 : vector<16x128xf32>
    %cst = arith.constant -1.000000e+02 : f32
    %7 = vector.broadcast %cst : f32 to vector<16x128xf32>
    %8 = arith.maximumf %6, %7 : vector<16x128xf32>
    %cst_6 = arith.constant 1.000000e+00 : f32
    %9 = vector.broadcast %cst_6 : f32 to vector<16x128xf32>
    %10 = arith.subf %9, %3 : vector<16x128xf32>
    %11 = math.log %10 : vector<16x128xf32>
    %cst_7 = arith.constant -1.000000e+02 : f32
    %12 = vector.broadcast %cst_7 : f32 to vector<16x128xf32>
    %13 = arith.maximumf %11, %12 : vector<16x128xf32>
    %14 = arith.mulf %4, %8 : vector<16x128xf32>
    %cst_8 = arith.constant 1.000000e+00 : f32
    %15 = vector.broadcast %cst_8 : f32 to vector<16x128xf32>
    %16 = arith.subf %15, %4 : vector<16x128xf32>
    %17 = arith.mulf %16, %13 : vector<16x128xf32>
    %18 = arith.addf %14, %17 : vector<16x128xf32>
    %cst_9 = arith.constant 0.000000e+00 : f32
    %19 = vector.broadcast %cst_9 : f32 to vector<16x128xf32>
    %20 = arith.subf %19, %18 : vector<16x128xf32>
    %cst_10 = arith.constant 0.000000e+00 : f32
    %21 = vector.broadcast %cst_10 : f32 to vector<16x128xf32>
    %22 = arith.cmpf oeq, %5, %21 : vector<16x128xf32>
    %cst_11 = arith.constant 2.550000e+02 : f32
    %23 = vector.broadcast %cst_11 : f32 to vector<16x128xf32>
    %24 = arith.cmpf oeq, %5, %23 : vector<16x128xf32>
    %cst_12 = arith.constant 4.000000e+00 : f32
    %25 = vector.broadcast %cst_12 : f32 to vector<16x128xf32>
    %26 = arith.select %24, %25, %5 : vector<16x128xi1>, vector<16x128xf32>
    %cst_13 = arith.constant 1.000000e+00 : f32
    %27 = vector.broadcast %cst_13 : f32 to vector<16x128xf32>
    %28 = arith.select %22, %27, %26 : vector<16x128xi1>, vector<16x128xf32>
    %29 = arith.mulf %20, %28 : vector<16x128xf32>
    %c0_14 = arith.constant 0 : index
    %c0_15 = arith.constant 0 : index
    %30 = vector.load %arg4[%c0_14, %c0_15] : memref<16x128xf32, #tpu.memory_space<vmem>>, vector<16x128xf32>
    tpu.vector_store %arg4[%c0_14, %c0_15], %29 {strides = array<i32>} : memref<16x128xf32, #tpu.memory_space<vmem>>, vector<16x128xf32>,
    %c0_16 = arith.constant 0 : index
    %c0_17 = arith.constant 0 : index
    %c0_18 = arith.constant 0 : index
    %31 = vector.load %arg5[%c0_16, %c0_17, %c0_18] : memref<3x8x128xf32, #tpu.memory_space<vmem>>, vector<1x8x128xf32>
    %32 = vector.shape_cast %31 : vector<1x8x128xf32> to vector<8x128xf32>
    %33 = arith.mulf %3, %4 : vector<16x128xf32>
    %34 = vector.shape_cast %33 : vector<16x128xf32> to vector<2x8x128xf32>
    %cst_19 = arith.constant dense<0.000000e+00> : vector<8x128xf32>
    %35 = vector.multi_reduction <add>, %34, %cst_19 [0] : vector<2x8x128xf32> to vector<8x128xf32>
    %36 = arith.addf %32, %35 : vector<8x128xf32>
    %c0_20 = arith.constant 0 : index
    %c0_21 = arith.constant 0 : index
    %c0_22 = arith.constant 0 : index
    %37 = vector.load %arg5[%c0_20, %c0_21, %c0_22] : memref<3x8x128xf32, #tpu.memory_space<vmem>>, vector<1x8x128xf32>
    %38 = vector.shape_cast %37 : vector<1x8x128xf32> to vector<8x128xf32>
    %39 = vector.shape_cast %36 : vector<8x128xf32> to vector<1x8x128xf32>
    tpu.vector_store %arg5[%c0_20, %c0_21, %c0_22], %39 {strides = array<i32>} : memref<3x8x128xf32, #tpu.memory_space<vmem>>, vector<1x8x128xf32>,
    %c1 = arith.constant 1 : index
    %c0_23 = arith.constant 0 : index
    %c0_24 = arith.constant 0 : index
    %40 = vector.load %arg5[%c1, %c0_23, %c0_24] : memref<3x8x128xf32, #tpu.memory_space<vmem>>, vector<1x8x128xf32>
    %41 = vector.shape_cast %40 : vector<1x8x128xf32> to vector<8x128xf32>
    %42 = vector.shape_cast %3 : vector<16x128xf32> to vector<2x8x128xf32>
    %cst_25 = arith.constant dense<0.000000e+00> : vector<8x128xf32>
    %43 = vector.multi_reduction <add>, %42, %cst_25 [0] : vector<2x8x128xf32> to vector<8x128xf32>
    %44 = arith.addf %41, %43 : vector<8x128xf32>
    %c1_26 = arith.constant 1 : index
    %c0_27 = arith.constant 0 : index
    %c0_28 = arith.constant 0 : index
    %45 = vector.load %arg5[%c1_26, %c0_27, %c0_28] : memref<3x8x128xf32, #tpu.memory_space<vmem>>, vector<1x8x128xf32>
    %46 = vector.shape_cast %45 : vector<1x8x128xf32> to vector<8x128xf32>
    %47 = vector.shape_cast %44 : vector<8x128xf32> to vector<1x8x128xf32>
    tpu.vector_store %arg5[%c1_26, %c0_27, %c0_28], %47 {strides = array<i32>} : memref<3x8x128xf32, #tpu.memory_space<vmem>>, vector<1x8x128xf32>,
    %c2 = arith.constant 2 : index
    %c0_29 = arith.constant 0 : index
    %c0_30 = arith.constant 0 : index
    %48 = vector.load %arg5[%c2, %c0_29, %c0_30] : memref<3x8x128xf32, #tpu.memory_space<vmem>>, vector<1x8x128xf32>
    %49 = vector.shape_cast %48 : vector<1x8x128xf32> to vector<8x128xf32>
    %50 = vector.shape_cast %4 : vector<16x128xf32> to vector<2x8x128xf32>
    %cst_31 = arith.constant dense<0.000000e+00> : vector<8x128xf32>
    %51 = vector.multi_reduction <add>, %50, %cst_31 [0] : vector<2x8x128xf32> to vector<8x128xf32>
    %52 = arith.addf %49, %51 : vector<8x128xf32>
    %c2_32 = arith.constant 2 : index
    %c0_33 = arith.constant 0 : index
    %c0_34 = arith.constant 0 : index
    %53 = vector.load %arg5[%c2_32, %c0_33, %c0_34] : memref<3x8x128xf32, #tpu.memory_space<vmem>>, vector<1x8x128xf32>
    %54 = vector.shape_cast %53 : vector<1x8x128xf32> to vector<8x128xf32>
    %55 = vector.shape_cast %52 : vector<8x128xf32> to vector<1x8x128xf32>
    tpu.vector_store %arg5[%c2_32, %c0_33, %c0_34], %55 {strides = array<i32>} : memref<3x8x128xf32, #tpu.memory_space<vmem>>, vector<1x8x128xf32>,
    return
  }
  func.func @transform_0(%arg0: i32) -> (i32, i32) {
    %c0_i32 = arith.constant 0 : i32
    %c0_i32_0 = arith.constant 0 : i32
    return %arg0, %c0_i32 : i32, i32
  }
  func.func @transform_1(%arg0: i32) -> (i32, i32) {
    %c0_i32 = arith.constant 0 : i32
    %c0_i32_0 = arith.constant 0 : i32
    return %arg0, %c0_i32 : i32, i32
  }
  func.func @transform_2(%arg0: i32) -> (i32, i32) {
    %c0_i32 = arith.constant 0 : i32
    %c0_i32_0 = arith.constant 0 : i32
    return %arg0, %c0_i32 : i32, i32
  }
  func.func @transform_3(%arg0: i32) -> (i32, i32) {
    %c0_i32 = arith.constant 0 : i32
    %c0_i32_0 = arith.constant 0 : i32
    return %arg0, %c0_i32 : i32, i32
  }
  func.func @transform_4(%arg0: i32) -> (i32, i32, i32) {
    %c0_i32 = arith.constant 0 : i32
    %c0_i32_0 = arith.constant 0 : i32
    %c0_i32_1 = arith.constant 0 : i32
    %c0_i32_2 = arith.constant 0 : i32
    return %c0_i32, %c0_i32_0, %c0_i32_1 : i32, i32, i32
  }
}

</mosaic_0001>

<llo_original>
// kernel: tpu_custom_call.1
$region0: #{tpu_custom_call.1}
  #allocation0 [shape = 'u32[]', space=smem, size = 0x4, offset = 0x4, fixed_abs, tag = 'smem constant byte address 0x4 - core index']
  #allocation1 [shape = 'u32[144,128]{1,0:T(1,128)}', space=vmem, size = 0x12000, scoped, tag = 'internal scratch']
  %s0 = inlined_call_operand.hbm [shape: f32[64,128], index: 0, kind: input, shape index: {}]
  %s1 = inlined_call_operand.hbm [shape: f32[64,128], index: 1, kind: input, shape index: {}]
  %s2 = inlined_call_operand.hbm [shape: f32[64,128], index: 2, kind: input, shape index: {}]
  %s3 = inlined_call_operand.hbm [shape: f32[64,128], index: 3, kind: output, shape index: {0}]
  %s4 = inlined_call_operand.hbm [shape: f32[3,8,128], index: 4, kind: output, shape index: {1}]
  %5 = xla_tuple %s3, %s4
  %s6 = sld [smem:[#allocation0]]
  $region69: #{tpu_custom_call.1} parent=0
    _
  %s8 = ssub.s32 1, %s6
  %s9 = scalar_select 0, %s8, %s6
  $region1: #{tpu_custom_call.1} parent=0
    #allocation2 [shape = 'u8[16384]{0}', space=vmem, size = 0x4000, scoped, tag = 'input window, operand 0']
    #allocation3 [shape = 's32[2]{0}', space=sflag, size = 0x8, scoped, tag = 'scoped memory for tpu_custom_call.1']
    #allocation4 [shape = 's32[2]{0}', space=sflag, size = 0x8, scoped, tag = 'scoped memory for tpu_custom_call.1']
    #allocation5 [shape = 'u8[16384]{0}', space=vmem, size = 0x4000, scoped, tag = 'input window, operand 1']
    #allocation6 [shape = 's32[2]{0}', space=sflag, size = 0x8, scoped, tag = 'scoped memory for tpu_custom_call.1']
    #allocation7 [shape = 'u8[16384]{0}', space=vmem, size = 0x4000, scoped, tag = 'input window, operand 2']
    #allocation8 [shape = 'u8[16384]{0}', space=vmem, size = 0x4000, scoped, tag = 'output window, operand 0']
    #allocation9 [shape = 'u8[12288]{0}', space=vmem, size = 0x3000, scoped, tag = 'output window, operand 1, single buffered']
    #allocation10 [shape = 's32[1]{0}', space=sflag, size = 0x4, scoped, tag = 'scoped memory for tpu_custom_call.1']
    %10 = vsyncpa [#allocation3], 0
    %s11 = scalar_lea.sflag [#allocation3], 1
    %12 = vsyncpa %s11, 0
    %13 = vsyncpa [#allocation6], 0
    %s14 = scalar_lea.sflag [#allocation6], 1
    %15 = vsyncpa %s14, 0
    %16 = vsyncpa [#allocation4], 0
    %s17 = scalar_lea.sflag [#allocation4], 1
    %18 = vsyncpa %s17, 0
    %19 = vsyncpa [#allocation10], 0
    loop: start=0, step=1, limit=6
    $region2: #{tpu_custom_call.1} parent=1 // loop_pre_header
      _
    $region3: #{tpu_custom_call.1} parent=1 // loop_header
      %s21 = sphi 0, %s25
      %p22 = scmp.ge.s32.totalorder %s21, 6
      %s31 = sphi 0, %s33
      %s34 = sphi 0, %s31
      %s35 = sphi 0, %s34
      %s51 = sphi 0, %s35
      %s57 = sphi 0, %s59
      %s60 = sphi 0, %s57
      %s61 = sphi 0, %s60
      %s77 = sphi 0, %s61
      %s83 = sphi 0, %s85
      %s86 = sphi 0, %s83
      %s87 = sphi 0, %s86
      %s103 = sphi 0, %s87
      %s109 = sphi 0, %s111
      %s112 = sphi 0, %s109
      %s113 = sphi 0, %s112
      %s129 = sphi 0, %s113
      %s133 = sphi 0, %s133
      %s135 = sphi 0, %s133
      %s136 = sphi 0, %s135
      %s150 = sphi 0, %s136
    $region4: #{tpu_custom_call.1} parent=1 // loop_header_branch
      %24 = sbr.rel (%p22) target = $region8
    $region5: #{tpu_custom_call.1} parent=1 // loop_body
      %s26 = ssub.s32 %s21, 1
      %s27 = ssub.s32 %s21, 2
      %s28 = sadd.s32 %s21, 1
      %s29 = ssub.s32 %s21, %s28
      %p30 = scmp.eq.s32.totalorder %s29, 0
      %s32 = sadd.s32 %s31, 1
      %s33 = scalar_select %p30, %s31, %s32
      %p36 = pneg %p30
      %p37 = scmp.eq.s32.totalorder %s21, 3
      %p38 = por %p36, %p37
      %p39 = scmp.ne.s32.totalorder %s31, %s34
      %p40 = scmp.eq.s32.totalorder %s21, 0
      %p41 = por %p39, %p40
      %p42 = scmp.ne.s32.totalorder %s31, %s34
      %p43 = scmp.eq.s32.totalorder %s26, 3
      %p44 = por %p42, %p43
      %p45 = scmp.ne.s32.totalorder %s34, %s35
      %p46 = scmp.eq.s32.totalorder %s26, 0
      %p47 = por %p45, %p46
      %p48 = scmp.ne.s32.totalorder %s34, %s35
      %p49 = scmp.eq.s32.totalorder %s27, 3
      %p50 = por %p48, %p49
      %p52 = scmp.ne.s32.totalorder %s35, %s51
      %p53 = scmp.eq.s32.totalorder %s27, 0
      %p54 = por %p52, %p53
      %s55 = ssub.s32 %s21, %s28
      %p56 = scmp.eq.s32.totalorder %s55, 0
      %s58 = sadd.s32 %s57, 1
      %s59 = scalar_select %p56, %s57, %s58
      %p62 = pneg %p56
      %p63 = scmp.eq.s32.totalorder %s21, 3
      %p64 = por %p62, %p63
      %p65 = scmp.ne.s32.totalorder %s57, %s60
      %p66 = scmp.eq.s32.totalorder %s21, 0
      %p67 = por %p65, %p66
      %p68 = scmp.ne.s32.totalorder %s57, %s60
      %p69 = scmp.eq.s32.totalorder %s26, 3
      %p70 = por %p68, %p69
      %p71 = scmp.ne.s32.totalorder %s60, %s61
      %p72 = scmp.eq.s32.totalorder %s26, 0
      %p73 = por %p71, %p72
      %p74 = scmp.ne.s32.totalorder %s60, %s61
      %p75 = scmp.eq.s32.totalorder %s27, 3
      %p76 = por %p74, %p75
      %p78 = scmp.ne.s32.totalorder %s61, %s77
      %p79 = scmp.eq.s32.totalorder %s27, 0
      %p80 = por %p78, %p79
      %s81 = ssub.s32 %s21, %s28
      %p82 = scmp.eq.s32.totalorder %s81, 0
      %s84 = sadd.s32 %s83, 1
      %s85 = scalar_select %p82, %s83, %s84
      %p88 = pneg %p82
      %p89 = scmp.eq.s32.totalorder %s21, 3
      %p90 = por %p88, %p89
      %p91 = scmp.ne.s32.totalorder %s83, %s86
      %p92 = scmp.eq.s32.totalorder %s21, 0
      %p93 = por %p91, %p92
      %p94 = scmp.ne.s32.totalorder %s83, %s86
      %p95 = scmp.eq.s32.totalorder %s26, 3
      %p96 = por %p94, %p95
      %p97 = scmp.ne.s32.totalorder %s86, %s87
      %p98 = scmp.eq.s32.totalorder %s26, 0
      %p99 = por %p97, %p98
      %p100 = scmp.ne.s32.totalorder %s86, %s87
      %p101 = scmp.eq.s32.totalorder %s27, 3
      %p102 = por %p100, %p101
      %p104 = scmp.ne.s32.totalorder %s87, %s103
      %p105 = scmp.eq.s32.totalorder %s27, 0
      %p106 = por %p104, %p105
      %s107 = ssub.s32 %s21, %s28
      %p108 = scmp.eq.s32.totalorder %s107, 0
      %s110 = sadd.s32 %s109, 1
      %s111 = scalar_select %p108, %s109, %s110
      %p114 = pneg %p108
      %p115 = scmp.eq.s32.totalorder %s21, 3
      %p116 = por %p114, %p115
      %p117 = scmp.ne.s32.totalorder %s109, %s112
      %p118 = scmp.eq.s32.totalorder %s21, 0
      %p119 = por %p117, %p118
      %p120 = scmp.ne.s32.totalorder %s109, %s112
      %p121 = scmp.eq.s32.totalorder %s26, 3
      %p122 = por %p120, %p121
      %p123 = scmp.ne.s32.totalorder %s112, %s113
      %p124 = scmp.eq.s32.totalorder %s26, 0
      %p125 = por %p123, %p124
      %p126 = scmp.ne.s32.totalorder %s112, %s113
      %p127 = scmp.eq.s32.totalorder %s27, 3
      %p128 = por %p126, %p127
      %p130 = scmp.ne.s32.totalorder %s113, %s129
      %p131 = scmp.eq.s32.totalorder %s27, 0
      %p132 = por %p130, %p131
      %s134 = sadd.s32 %s133, 1
      %p137 = scmp.eq.s32.totalorder %s21, 3
      %p138 = scmp.ne.s32.totalorder %s133, %s135
      %p139 = scmp.eq.s32.totalorder %s21, 0
      %p140 = por %p138, %p139
      %p141 = scmp.ne.s32.totalorder %s133, %s135
      %p142 = scmp.eq.s32.totalorder %s26, 3
      %p143 = por %p141, %p142
      %p144 = scmp.ne.s32.totalorder %s135, %s136
      %p145 = scmp.eq.s32.totalorder %s26, 0
      %p146 = por %p144, %p145
      %p147 = scmp.ne.s32.totalorder %s135, %s136
      %p148 = scmp.eq.s32.totalorder %s27, 3
      %p149 = por %p147, %p148
      %p151 = scmp.ne.s32.totalorder %s136, %s150
      %p152 = scmp.eq.s32.totalorder %s27, 0
      %p153 = por %p151, %p152
      %p154 = scmp.le.s32.totalorder 1, %s21
      %p155 = scmp.lt.s32.totalorder %s21, 5
      %p156 = pnand %p154, %p155
      %p157 = pneg %p156
      // Predicated region
      $region9: #{tpu_custom_call.1} parent=5 // pred_check
        _
      $region10: #{tpu_custom_call.1} parent=5 // pred_check_branch
        %159 = sbr.rel (%p156) target = $region12
      $region11: #{tpu_custom_call.1} parent=5 // pred_region
        %s160 = ssub.s32 %s21, 1
      $region12: #{tpu_custom_call.1} parent=5 // pred_fallthru
        _
      %p161 = scmp.lt.s32.totalorder %s21, 4
      // Predicated region
      $region13: #{tpu_custom_call.1} parent=5 // pred_check
        %p162 = pneg %p161
      $region14: #{tpu_custom_call.1} parent=5 // pred_check_branch
        %164 = sbr.rel (%p162) target = $region16
      $region15: #{tpu_custom_call.1} parent=5 // pred_region
        // Predicated region
        $region17: #{tpu_custom_call.1} parent=15 // pred_check
          %p165 = pneg %p41
        $region18: #{tpu_custom_call.1} parent=15 // pred_check_branch
          %167 = sbr.rel (%p165) target = $region20
        $region19: #{tpu_custom_call.1} parent=15 // pred_region
          %s168 = sand.u32 %s31, 1
          %s169 = scalar_lea.sflag [#allocation3], %s168
          %s170 = sand.u32 %s31, 1
          %s171 = smul.addr %s170, 16
          %s172 = scalar_lea.vmem [#allocation2], %s171
          %s173 = smul.u32 2, %s21
          %s175 = ssub.s32 256, 256
          %176 = vsyncadd %s169, %s175
          %s177 = smul.addr %s173, 128
          %s178 = scalar_lea.hbm %s0, %s177
          %s179 = sshll.u32 %s172, 4
          %s180 = int_to_ptr.vmem [resolvable:$true] %s179
          %185 = dma.hbm_to_vmem [thread:$0]  %s178, 256, %s180, %s169, 128, 128, 8
        $region20: #{tpu_custom_call.1} parent=15 // pred_fallthru
          _
        // Predicated region
        $region21: #{tpu_custom_call.1} parent=15 // pred_check
          %p186 = pneg %p67
        $region22: #{tpu_custom_call.1} parent=15 // pred_check_branch
          %188 = sbr.rel (%p186) target = $region24
        $region23: #{tpu_custom_call.1} parent=15 // pred_region
          %s189 = sand.u32 %s21, 1
          %s190 = scalar_lea.sflag [#allocation6], %s189
          %s191 = sand.u32 %s57, 1
          %s192 = smul.addr %s191, 16
          %s193 = scalar_lea.vmem [#allocation5], %s192
          %s194 = smul.u32 2, %s21
          %s196 = ssub.s32 256, 256
          %197 = vsyncadd %s190, %s196
          %s198 = smul.addr %s194, 128
          %s199 = scalar_lea.hbm %s1, %s198
          %s200 = sshll.u32 %s193, 4
          %s201 = int_to_ptr.vmem [resolvable:$true] %s200
          %206 = dma.hbm_to_vmem [thread:$0]  %s199, 256, %s201, %s190, 128, 128, 8
        $region24: #{tpu_custom_call.1} parent=15 // pred_fallthru
          _
        // Predicated region
        $region25: #{tpu_custom_call.1} parent=15 // pred_check
          %p207 = pneg %p93
        $region26: #{tpu_custom_call.1} parent=15 // pred_check_branch
          %209 = sbr.rel (%p207) target = $region28
        $region27: #{tpu_custom_call.1} parent=15 // pred_region
          %s210 = sand.u32 %s21, 1
          %s211 = scalar_lea.sflag [#allocation6], %s210
          %s212 = sand.u32 %s83, 1
          %s213 = smul.addr %s212, 16
          %s214 = scalar_lea.vmem [#allocation7], %s213
          %s215 = smul.u32 2, %s21
          %s217 = ssub.s32 256, 256
          %218 = vsyncadd %s211, %s217
          %s219 = smul.addr %s215, 128
          %s220 = scalar_lea.hbm %s2, %s219
          %s221 = sshll.u32 %s214, 4
          %s222 = int_to_ptr.vmem [resolvable:$true] %s221
          %227 = dma.hbm_to_vmem [thread:$0]  %s220, 256, %s222, %s211, 128, 128, 8
        $region28: #{tpu_custom_call.1} parent=15 // pred_fallthru
          _
      $region16: #{tpu_custom_call.1} parent=5 // pred_fallthru
        _
      %p228 = scmp.le.s32.totalorder 1, %s21
      %p229 = scmp.lt.s32.totalorder %s21, 5
      %p230 = pnand %p228, %p229
      %p231 = pneg %p230
      // Predicated region
      $region29: #{tpu_custom_call.1} parent=5 // pred_check
        _
      $region30: #{tpu_custom_call.1} parent=5 // pred_check_branch
        %233 = sbr.rel (%p230) target = $region32
      $region31: #{tpu_custom_call.1} parent=5 // pred_region
        %s234 = ssub.s32 %s21, 1
        %s235 = sand.u32 %s34, 1
        %s236 = scalar_lea.sflag [#allocation3], %s235
        %s237 = sand.u32 %s34, 1
        %s238 = smul.addr %s237, 16
        %s239 = scalar_lea.vmem [#allocation2], %s238
        // Predicated region
        $region33: #{tpu_custom_call.1} parent=31 // pred_check
          %p240 = pneg %p47
        $region34: #{tpu_custom_call.1} parent=31 // pred_check_branch
          %242 = sbr.rel (%p240) target = $region36
        $region35: #{tpu_custom_call.1} parent=31 // pred_region
          %243 = dma.done %s236, 256
        $region36: #{tpu_custom_call.1} parent=31 // pred_fallthru
          _
        %s244 = sand.u32 %s26, 1
        %s245 = scalar_lea.sflag [#allocation6], %s244
        %s246 = sand.u32 %s60, 1
        %s247 = smul.addr %s246, 16
        %s248 = scalar_lea.vmem [#allocation5], %s247
        // Predicated region
        $region37: #{tpu_custom_call.1} parent=31 // pred_check
          %p249 = pneg %p73
        $region38: #{tpu_custom_call.1} parent=31 // pred_check_branch
          %251 = sbr.rel (%p249) target = $region40
        $region39: #{tpu_custom_call.1} parent=31 // pred_region
          %252 = dma.done %s245, 256
        $region40: #{tpu_custom_call.1} parent=31 // pred_fallthru
          _
        %s253 = sand.u32 %s26, 1
        %s254 = scalar_lea.sflag [#allocation6], %s253
        %s255 = sand.u32 %s86, 1
        %s256 = smul.addr %s255, 16
        %s257 = scalar_lea.vmem [#allocation7], %s256
        // Predicated region
        $region41: #{tpu_custom_call.1} parent=31 // pred_check
          %p258 = pneg %p99
        $region42: #{tpu_custom_call.1} parent=31 // pred_check_branch
          %260 = sbr.rel (%p258) target = $region44
        $region43: #{tpu_custom_call.1} parent=31 // pred_region
          %261 = dma.done %s254, 256
        $region44: #{tpu_custom_call.1} parent=31 // pred_fallthru
          _
        %s262 = sand.u32 %s34, 1
        %s263 = scalar_lea.sflag [#allocation3], %s262
        %s264 = sand.u32 %s34, 1
        %s265 = smul.addr %s264, 16
        %s266 = scalar_lea.vmem [#allocation2], %s265
        %p267 = pneg %p47
        %p268 = pneg %p44
        %s269 = sand.u32 %s26, 1
        %s270 = scalar_lea.sflag [#allocation6], %s269
        %s271 = sand.u32 %s60, 1
        %s272 = smul.addr %s271, 16
        %s273 = scalar_lea.vmem [#allocation5], %s272
        %p274 = pneg %p73
        %p275 = pneg %p70
        %s276 = sand.u32 %s26, 1
        %s277 = scalar_lea.sflag [#allocation6], %s276
        %s278 = sand.u32 %s86, 1
        %s279 = smul.addr %s278, 16
        %s280 = scalar_lea.vmem [#allocation7], %s279
        %p281 = pneg %p99
        %p282 = pneg %p96
        %p283 = pneg %p125
        %p284 = pneg %p122
        %s285 = sand.u32 %s112, 1
        %s286 = scalar_lea.sflag [#allocation4], %s285
        %s287 = sand.u32 %s112, 1
        %s288 = smul.addr %s287, 16
        %s289 = scalar_lea.vmem [#allocation8], %s288
        %p290 = pneg %p146
        %p291 = pneg %p143
        %s292 = smul.u32 2, %s26
        %s293 = smul.u32 2, %s26
        %s294 = smul.u32 2, %s26
        %s295 = smul.u32 2, %s26
        %p296 = scmp.eq.s32.totalorder %s26, 0
        // Predicated region
        $region45: #{tpu_custom_call.1} parent=31 // pred_check
          %p297 = pneg %p296
        $region46: #{tpu_custom_call.1} parent=31 // pred_check_branch
          %299 = sbr.rel (%p297) target = $region48
        $region47: #{tpu_custom_call.1} parent=31 // pred_region
          %300 = vst [vmem:[#allocation9] sm:$0xff] 0.0
          %301 = vst [vmem:[#allocation9 + $0x8] sm:$0xff] 0.0
          %302 = vst [vmem:[#allocation9 + $0x10] sm:$0xff] 0.0
        $region48: #{tpu_custom_call.1} parent=31 // pred_fallthru
          _
        %v303 = vld [vmem:[%s239] sm:$0xff]
        %v304 = vld [vmem:[%s239 + $0x8] sm:$0xff]
        %v305 = vld [vmem:[%s248] sm:$0xff]
        %v306 = vld [vmem:[%s248 + $0x8] sm:$0xff]
        %v307 = vld [vmem:[%s257] sm:$0xff]
        %v308 = vld [vmem:[%s257 + $0x8] sm:$0xff]
        %v309 = vlog2.pop %v303
        %v310 = vmul.f32 %v309, 0.6931472
        %v311 = vlog2.pop %v304
        %v312 = vmul.f32 %v311, 0.6931472
        %v313 = vmax.f32 %v310, -100.0
        %v314 = vmax.f32 %v312, -100.0
        %v315 = vsub.f32 1.0, %v303
        %v316 = vsub.f32 1.0, %v304
        %v317 = vlog2.pop %v315
        %v318 = vmul.f32 %v317, 0.6931472
        %v319 = vlog2.pop %v316
        %v320 = vmul.f32 %v319, 0.6931472
        %v321 = vmax.f32 %v318, -100.0
        %v322 = vmax.f32 %v320, -100.0
        %v323 = vmul.f32 %v305, %v313
        %v324 = vmul.f32 %v306, %v314
        %v325 = vsub.f32 1.0, %v305
        %v326 = vsub.f32 1.0, %v306
        %v327 = vmul.f32 %v325, %v321
        %v328 = vmul.f32 %v326, %v322
        %v329 = vadd.f32 %v323, %v327
        %v330 = vadd.f32 %v324, %v328
        %v331 = vsub.f32 0.0, %v329
        %v332 = vsub.f32 0.0, %v330
        %vm333 = vcmp.eq.f32.partialorder %v307, 0.0
        %vm334 = vcmp.eq.f32.partialorder %v308, 0.0
        %vm335 = vcmp.eq.f32.partialorder %v307, 255.0
        %vm336 = vcmp.eq.f32.partialorder %v308, 255.0
        %v337 = vsel %vm335, 4.0, %v307
        %v338 = vsel %vm336, 4.0, %v308
        %v339 = vsel %vm333, 1.0, %v337
        %v340 = vsel %vm334, 1.0, %v338
        %v341 = vmul.f32 %v331, %v339
        %v342 = vmul.f32 %v332, %v340
        %343 = vst [vmem:[%s289] sm:$0xff] %v341
        %344 = vst [vmem:[%s289 + $0x8] sm:$0xff] %v342
        %v345 = vld [vmem:[#allocation9] sm:$0xff]
        %v346 = vmul.f32 %v303, %v305
        %v347 = vmul.f32 %v304, %v306
        %v348 = vadd.f32 %v346, %v347
        %v349 = vadd.f32 %v345, %v348
        %350 = vst [vmem:[#allocation9] sm:$0xff] %v349
        %s351 = scalar_lea.vmem [#allocation9], 8
        %v352 = vld [vmem:[%s351] sm:$0xff]
        %v353 = vadd.f32 %v303, %v304
        %v354 = vadd.f32 %v352, %v353
        %355 = vst [vmem:[%s351] sm:$0xff] %v354
        %s356 = scalar_lea.vmem [#allocation9], 16
        %v357 = vld [vmem:[%s356] sm:$0xff]
        %v358 = vadd.f32 %v305, %v306
        %v359 = vadd.f32 %v357, %v358
        %360 = vst [vmem:[%s356] sm:$0xff] %v359
        %s361 = sand.u32 %s112, 1
        %s362 = scalar_lea.sflag [#allocation4], %s361
        %s363 = sand.u32 %s112, 1
        %s364 = smul.addr %s363, 16
        %s365 = scalar_lea.vmem [#allocation8], %s364
        // Predicated region
        $region49: #{tpu_custom_call.1} parent=31 // pred_check
          %p366 = pneg %p122
        $region50: #{tpu_custom_call.1} parent=31 // pred_check_branch
          %368 = sbr.rel (%p366) target = $region52
        $region51: #{tpu_custom_call.1} parent=31 // pred_region
          %s369 = smul.u32 2, %s26
          %s371 = ssub.s32 256, 256
          %372 = vsyncadd %s362, %s371
          %s373 = smul.addr %s369, 128
          %s374 = scalar_lea.hbm %s3, %s373
          %s375 = sshll.u32 %s365, 4
          %s376 = int_to_ptr.vmem [resolvable:$true] %s375
          %381 = dma.vmem_to_hbm [thread:$0]  %s376, 256, %s374, %s362, 128, 128, 8
        $region52: #{tpu_custom_call.1} parent=31 // pred_fallthru
          _
        // Predicated region
        $region53: #{tpu_custom_call.1} parent=31 // pred_check
          %p382 = pneg %p143
        $region54: #{tpu_custom_call.1} parent=31 // pred_check_branch
          %384 = sbr.rel (%p382) target = $region56
        $region55: #{tpu_custom_call.1} parent=31 // pred_region
          %s386 = ssub.s32 384, 384
          %387 = vsyncadd [#allocation10], %s386
          %s388 = sshll.u32 [#allocation9], 4
          %s389 = int_to_ptr.vmem [resolvable:$true] %s388
          %394 = dma.vmem_to_hbm [thread:$0]  %s389, 384, %s4, [#allocation10], 128, 128, 8
        $region56: #{tpu_custom_call.1} parent=31 // pred_fallthru
          _
        // Predicated region
        $region57: #{tpu_custom_call.1} parent=31 // pred_check
          %p395 = pneg %p143
        $region58: #{tpu_custom_call.1} parent=31 // pred_check_branch
          %397 = sbr.rel (%p395) target = $region60
        $region59: #{tpu_custom_call.1} parent=31 // pred_region
          %398 = dma.done [#allocation10], 384
        $region60: #{tpu_custom_call.1} parent=31 // pred_fallthru
          _
      $region32: #{tpu_custom_call.1} parent=5 // pred_fallthru
        _
      %p399 = scmp.le.s32.totalorder 2, %s21
      // Predicated region
      $region61: #{tpu_custom_call.1} parent=5 // pred_check
        %p400 = pneg %p399
      $region62: #{tpu_custom_call.1} parent=5 // pred_check_branch
        %402 = sbr.rel (%p400) target = $region64
      $region63: #{tpu_custom_call.1} parent=5 // pred_region
        %s403 = ssub.s32 %s21, 2
        // Predicated region
        $region65: #{tpu_custom_call.1} parent=63 // pred_check
          %p404 = pneg %p128
        $region66: #{tpu_custom_call.1} parent=63 // pred_check_branch
          %406 = sbr.rel (%p404) target = $region68
        $region67: #{tpu_custom_call.1} parent=63 // pred_region
          %s407 = sand.u32 %s113, 1
          %s408 = scalar_lea.sflag [#allocation4], %s407
          %s409 = sand.u32 %s113, 1
          %s410 = smul.addr %s409, 16
          %s411 = scalar_lea.vmem [#allocation8], %s410
          %412 = dma.done %s408, 256
        $region68: #{tpu_custom_call.1} parent=63 // pred_fallthru
          _
      $region64: #{tpu_custom_call.1} parent=5 // pred_fallthru
        _
    $region6: #{tpu_custom_call.1} parent=1 // loop_footer
      %s25 = sadd.s32 1, %s21
    $region7: #{tpu_custom_call.1} parent=1 // loop_footer_branch
      %20 = sbr.rel target = $region3
    $region8: #{tpu_custom_call.1} parent=1 // loop_exit
      _
    %413 = vsyncpa [#allocation3], 1
    %s414 = scalar_lea.sflag [#allocation3], 1
    %415 = vsyncpa %s414, 1
    %416 = vsyncpa [#allocation6], 1
    %s417 = scalar_lea.sflag [#allocation6], 1
    %418 = vsyncpa %s417, 1
    %419 = vsyncpa [#allocation4], 1
    %s420 = scalar_lea.sflag [#allocation4], 1
    %421 = vsyncpa %s420, 1
    %422 = vsyncpa [#allocation10], 1

</llo_original>
